<compile_context>
chip_gen: v6e
topology: v6e:2x2x1
jax: 0.10.0
libtpu: 0.0.40
codegen_flags: <defaults>
</compile_context>

<pallas_src>
import functools

import jax
import jax.numpy as jnp
from jax import lax
from jax.experimental import pallas as pl
from jax.experimental.pallas import tpu as pltpu

_LANE = 128
_SUB = 8
# ~2 MiB of f32 per input per pipeline buffer; scaled by 4/itemsize below so
# the *byte* granule (not the element count) stays constant for bf16 inputs.
_DEFAULT_BLOCK_ELEMS = 512 * 1024


def _cdiv(a, b):
    return -(-a // b)


def _round_up(x, m):
    return _cdiv(x, m) * m


def _nudge_even(extent, tile, unit):
    """Find tile' (multiple of `unit`) giving an even cdiv(extent, tile'), else None."""
    n = _cdiv(extent, tile)
    if n % 2 == 0:
        return tile
    for target in range(n + 1, n + 8):
        if target % 2:
            continue
        t = _round_up(_cdiv(extent, target), unit)
        if t >= unit and _cdiv(extent, t) % 2 == 0:
            return t
    return None


def _pick_tiles(bc, hw, target_elems):
    """Pick (tbc, thw) for the lane-dense (bc, hw) layout.

    thw is always a multiple of 128 (ragged tail masked in-kernel) unless
    hw <= 128, in which case the full extent is used.  tbc is a multiple of 8
    (or the full extent for bc < 8).  Block ≈ target_elems elements.
    """
    if hw <= _LANE:
        thw = hw
    else:
        max_thw = max(_LANE, ((target_elems // _SUB) // _LANE) * _LANE)
        thw = min(max_thw, _round_up(hw, _LANE))
    rows = max(_SUB, _round_up(max(1, target_elems // thw), _SUB))
    if bc % _SUB == 0:
        tbc = min(rows, bc)
    elif bc < _SUB:
        tbc = bc                      # full extent, no row mask needed
    else:
        tbc = min(rows, _round_up(bc, _SUB))
    return tbc, thw


def _focal_kernel(*refs, tbc, thw, bc, hw, split_bc, nbc_inner, nhw_inner,
                  nbc_total, nhw_total, need_row_mask, need_col_mask, has_w):
    if has_w:
        pred_ref, gt_ref, w_ref, loss_ref, npos_ref = refs
    else:
        pred_ref, gt_ref, loss_ref, npos_ref = refs
        w_ref = None

    p = pl.program_id(0)
    i = pl.program_id(1)
    j = pl.program_id(2)

    # Zero the per-split resident accumulators at the start of each sweep.
    @pl.when((i == 0) & (j == 0))
    def _():
        loss_ref[...] = jnp.zeros_like(loss_ref)
        npos_ref[...] = jnp.zeros_like(npos_ref)

    def accumulate(extra_valid):
        pred = pred_ref[...].astype(jnp.float32)
        gt = gt_ref[...].astype(jnp.float32)
        pos_m = gt == 1.0
        neg_m = gt < 1.0
        if extra_valid is not None:
            pos_m = pos_m & extra_valid
            neg_m = neg_m & extra_valid
        # One transcendental per element (pos/neg masks are mutually exclusive).
        lg = jnp.log(jnp.where(pos_m, pred, 1.0 - pred))
        omp = 1.0 - pred
        omg = 1.0 - gt
        ng2 = omg * omg
        poly = jnp.where(pos_m, omp * omp, (pred * pred) * (ng2 * ng2))
        term = lg * poly
        if has_w:
            # Weight applied INSIDE the final validity select: padded rows of
            # the (tbc, 1) weight block may hold garbage/NaN (0*NaN hazard).
            term = term * w_ref[...].astype(jnp.float32)
        contrib = jnp.where(pos_m | neg_m, term, 0.0)
        loss_ref[...] += jnp.sum(contrib)
        npos_ref[...] += jnp.sum(jnp.where(pos_m, 1.0, 0.0))

    if not (need_row_mask or need_col_mask):
        accumulate(None)
        return

    row_block = p * nbc_inner + i if split_bc else i
    col_block = j if split_bc else p * nhw_inner + j

    is_edge = None
    if need_row_mask:
        is_edge = row_block == nbc_total - 1
    if need_col_mask:
        c = col_block == nhw_total - 1
        is_edge = c if is_edge is None else (is_edge | c)

    # Interior blocks skip all iota/compare/and work (VALU savings, esp. v7x).
    @pl.when(is_edge)
    def _():
        valid = None
        if need_row_mask:
            rid = lax.broadcasted_iota(jnp.int32, (tbc, thw), 0) + row_block * tbc
            valid = rid < bc
        if need_col_mask:
            cid = lax.broadcasted_iota(jnp.int32, (tbc, thw), 1) + col_block * thw
            cm = cid < hw
            valid = cm if valid is None else (valid & cm)
        accumulate(valid)

    @pl.when(jnp.logical_not(is_edge))
    def _():
        accumulate(None)


@functools.partial(jax.jit, static_argnames=("target_block_elems",))
def _focal_loss_2d(pred2, gt2, w_row=None, *,
                   target_block_elems=_DEFAULT_BLOCK_ELEMS):
    bc, hw = pred2.shape
    has_w = w_row is not None

    # Dtype-aware sizing: keep the block *byte* granule constant.
    itemsize = jnp.dtype(pred2.dtype).itemsize
    target_elems = max(1024, int(target_block_elems) * 4 // int(itemsize))

    tbc, thw = _pick_tiles(bc, hw, target_elems)
    nbc = _cdiv(bc, tbc)
    nhw = _cdiv(hw, thw)

    # 2-way split for the leading "parallel" grid axis (v7x dual TensorCore);
    # a cheap extra sequential step on single-TC v5e/v6e.  Nudge tile sizes so
    # the split is available even when both block counts come out odd.
    split_bc = False
    n_split = 1
    if nhw % 2 == 0:
        n_split = 2
    elif nbc % 2 == 0:
        n_split, split_bc = 2, True
    else:
        t2 = _nudge_even(hw, thw, _LANE) if hw > _LANE else None
        if t2 is not None:
            thw = t2
            nhw = _cdiv(hw, thw)
            n_split = 2
        else:
            t2 = _nudge_even(bc, tbc, _SUB) if bc > _SUB else None
            if t2 is not None:
                tbc = t2
                nbc = _cdiv(bc, tbc)
                n_split, split_bc = 2, True

    if split_bc:
        nbc_inner, nhw_inner = nbc // 2, nhw
    elif n_split == 2:
        nbc_inner, nhw_inner = nbc, nhw // 2
    else:
        nbc_inner, nhw_inner = nbc, nhw

    need_row_mask = (bc % tbc) != 0
    need_col_mask = (hw % thw) != 0

    if split_bc:
        data_map = lambda p, i, j: (p * nbc_inner + i, j)
        w_map = lambda p, i, j: (p * nbc_inner + i, 0)
    else:
        data_map = lambda p, i, j: (i, p * nhw_inner + j)
        w_map = lambda p, i, j: (i, 0)

    kernel = functools.partial(
        _focal_kernel,
        tbc=tbc, thw=thw, bc=bc, hw=hw,
        split_bc=split_bc, nbc_inner=nbc_inner, nhw_inner=nhw_inner,
        nbc_total=nbc, nhw_total=nhw,
        need_row_mask=need_row_mask, need_col_mask=need_col_mask,
        has_w=has_w,
    )

    in_specs = [pl.BlockSpec((tbc, thw), data_map),   # pred
                pl.BlockSpec((tbc, thw), data_map)]   # gt
    inputs = [pred2, gt2]
    if has_w:
        in_specs.append(pl.BlockSpec((tbc, 1), w_map))  # per-row channel weight
        inputs.append(w_row)

    acc_spec = pl.BlockSpec((1, 1, 1), lambda p, i, j: (p, 0, 0))
    loss_acc, npos_acc = pl.pallas_call(
        kernel,
        out_shape=(
            jax.ShapeDtypeStruct((n_split, 1, 1), jnp.float32),
            jax.ShapeDtypeStruct((n_split, 1, 1), jnp.float32),
        ),
        grid_spec=pltpu.PrefetchScalarGridSpec(
            num_scalar_prefetch=0,
            grid=(n_split, nbc_inner, nhw_inner),
            in_specs=in_specs,
            out_specs=(acc_spec, acc_spec),
        ),
        compiler_params=pltpu.CompilerParams(
            dimension_semantics=("parallel", "arbitrary", "arbitrary"),
            vmem_limit_bytes=32 * 1024 * 1024,
        ),
    )(*inputs)

    loss_sum = jnp.sum(loss_acc)
    num_pos = jnp.sum(npos_acc)
    # Reference: if num_pos > 2: loss = -(pos+neg)/num_pos ; else loss = 0.
    return jnp.where(num_pos > 2.0,
                     -loss_sum / jnp.maximum(num_pos, 1.0),
                     jnp.float32(0.0))


def focal_loss(pred, gt, weights_list=None,
               target_block_elems=_DEFAULT_BLOCK_ELEMS):
    """Matches FocalLoss.forward(out, target, weights_list)."""
    b, c, h, w = pred.shape
    pred2 = pred.reshape(b * c, h * w)
    gt2 = gt.reshape(b * c, h * w)
    if weights_list is None:
        w_row = None                                  # specialized no-weight kernel
    else:
        cw = jnp.asarray(weights_list, jnp.float32)   # (C,)
        w_row = jnp.tile(cw, b).reshape(b * c, 1)     # weight per (b,c) row
    return _focal_loss_2d(pred2, gt2, w_row,
                          target_block_elems=int(target_block_elems))


def _focal_loss_ref(pred, gt, weights_list=None):
    """Pure-JAX reference mirroring the PyTorch _neg_loss."""
    pred = pred.astype(jnp.float32)
    gt = gt.astype(jnp.float32)
    pos_inds = (gt == 1.0).astype(jnp.float32)
    neg_inds = (gt < 1.0).astype(jnp.float32)
    neg_weights = (1.0 - gt) ** 4
    pos_loss = jnp.log(pred) * (1.0 - pred) ** 2 * pos_inds
    neg_loss = jnp.log(1.0 - pred) * pred ** 2 * neg_weights * neg_inds
    num_pos = pos_inds.sum()
    if weights_list is None:
        p = pos_loss.sum()
        n = neg_loss.sum()
    else:
        cw = jnp.asarray(weights_list, jnp.float32)
        p = jnp.sum(pos_loss.sum(axis=(0, 2, 3)) * cw)
        n = jnp.sum(neg_loss.sum(axis=(0, 2, 3)) * cw)
    return jnp.where(num_pos > 2.0, -(p + n) / num_pos, 0.0)


if __name__ == "__main__":
    key = jax.random.PRNGKey(0)

    def make_inputs(k, shape, peak_frac=0.05):
        k1, k2, k3 = jax.random.split(k, 3)
        pred = jax.nn.sigmoid(jax.random.normal(k1, shape, jnp.float32))
        pred = jnp.clip(pred, 1e-4, 1.0 - 1e-4)
        u = jax.random.uniform(k2, shape, jnp.float32)
        soft = jax.random.uniform(k3, shape, jnp.float32) * 0.9
        gt = jnp.where(u < peak_frac, 1.0, soft)
        return pred, gt

    k0, k1, k2 = jax.random.split(key, 3)

    # 1) Base case (B,C,H,W) = (2,4,16,16), with and without channel weights.
    pred, gt = make_inputs(k0, (2, 4, 16, 16))
    loss = jax.block_until_ready(focal_loss(pred, gt))
    ref = _focal_loss_ref(pred, gt)
    assert jnp.allclose(loss, ref, rtol=1e-4, atol=1e-5), (loss, ref)

    wl = [1.0, 0.5, 2.0, 1.5]
    loss_w = jax.block_until_ready(focal_loss(pred, gt, weights_list=wl))
    ref_w = _focal_loss_ref(pred, gt, weights_list=wl)
    assert jnp.allclose(loss_w, ref_w, rtol=1e-4, atol=1e-5), (loss_w, ref_w)

    # 2) Ragged rows (bc=15) + ragged lane tail (hw=2080) + weights.
    pred2_, gt2_ = make_inputs(k1, (3, 5, 40, 52))
    wl2 = [1.0, 0.25, 2.0, 0.5, 1.5]
    loss2 = jax.block_until_ready(focal_loss(pred2_, gt2_, weights_list=wl2))
    ref2 = _focal_loss_ref(pred2_, gt2_, weights_list=wl2)
    assert jnp.allclose(loss2, ref2, rtol=1e-4, atol=1e-5), (loss2, ref2)

    # 3) Small forced tile: exercises interior AND edge (masked) block paths.
    pred3, gt3 = make_inputs(k2, (2, 4, 16, 24))
    loss3 = jax.block_until_ready(focal_loss(pred3, gt3, target_block_elems=2048))
    ref3 = _focal_loss_ref(pred3, gt3)
    assert jnp.allclose(loss3, ref3, rtol=1e-4, atol=1e-5), (loss3, ref3)

    # 4) num_pos <= 2 branch -> exactly zero.
    gt0 = jnp.clip(gt * 0.9, 0.0, 0.99)  # no exact 1.0 anywhere
    loss0 = jax.block_until_ready(focal_loss(pred, gt0))
    assert jnp.allclose(loss0, 0.0), loss0

    # 5) bf16 inputs (dtype-aware blocks; kernel upcasts in-register).
    pred_b = pred.astype(jnp.bfloat16)
    gt_b = gt.astype(jnp.bfloat16)
    loss_b = jax.block_until_ready(focal_loss(pred_b, gt_b))
    ref_b = _focal_loss_ref(pred_b, gt_b)
    assert jnp.allclose(loss_b, ref_b, rtol=1e-3, atol=1e-4), (loss_b, ref_b)

    print("KERNEL_OK")
</pallas_src>

<mosaic_0001>
module attributes {stable_mosaic.version = 11 : i64} {
  func.func @_focal_kernel(%arg0: i32, %arg1: i32, %arg2: i32, %arg3: memref<8x128xf32, #tpu.memory_space<vmem>>, %arg4: memref<8x128xf32, #tpu.memory_space<vmem>>, %arg5: memref<1x1x1xf32, #tpu.memory_space<vmem>>, %arg6: memref<1x1x1xf32, #tpu.memory_space<vmem>>) attributes {dimension_semantics = [#tpu.dimension_semantics<parallel>, #tpu.dimension_semantics<arbitrary>, #tpu.dimension_semantics<arbitrary>], iteration_bounds = array<i64: 2, 1, 1>, scalar_prefetch = 0 : i64, scratch_operands = 0 : i64, tpu.core_type = #tpu.core_type<tc>, window_params = [{transform_indices = @transform_0, window_bounds = array<i64: 8, 128>}, {transform_indices = @transform_1, window_bounds = array<i64: 8, 128>}, {transform_indices = @transform_2, window_bounds = array<i64: 1, 1, 1>}, {transform_indices = @transform_3, window_bounds = array<i64: 1, 1, 1>}]} {
    %c0_i32 = arith.constant 0 : i32
    %0 = arith.cmpi eq, %arg1, %c0_i32 : i32
    %c0_i32_0 = arith.constant 0 : i32
    %1 = arith.cmpi eq, %arg2, %c0_i32_0 : i32
    %2 = arith.andi %0, %1 : i1
    %3 = arith.extui %2 : i1 to i32
    %c0_i32_1 = arith.constant 0 : i32
    %4 = arith.cmpi ne, %3, %c0_i32_1 : i32
    scf.if %4 {
      %cst_26 = arith.constant 0.000000e+00 : f32
      %48 = vector.broadcast %cst_26 : f32 to vector<1x1x1xf32>
      %c0_27 = arith.constant 0 : index
      %c0_28 = arith.constant 0 : index
      %c0_29 = arith.constant 0 : index
      %49 = vector.load %arg5[%c0_27, %c0_28, %c0_29] : memref<1x1x1xf32, #tpu.memory_space<vmem>>, vector<1x1x1xf32>
      tpu.vector_store %arg5[%c0_27, %c0_28, %c0_29], %48 {strides = array<i32>} : memref<1x1x1xf32, #tpu.memory_space<vmem>>, vector<1x1x1xf32>,
      %cst_30 = arith.constant 0.000000e+00 : f32
      %50 = vector.broadcast %cst_30 : f32 to vector<1x1x1xf32>
      %c0_31 = arith.constant 0 : index
      %c0_32 = arith.constant 0 : index
      %c0_33 = arith.constant 0 : index
      %51 = vector.load %arg6[%c0_31, %c0_32, %c0_33] : memref<1x1x1xf32, #tpu.memory_space<vmem>>, vector<1x1x1xf32>
      tpu.vector_store %arg6[%c0_31, %c0_32, %c0_33], %50 {strides = array<i32>} : memref<1x1x1xf32, #tpu.memory_space<vmem>>, vector<1x1x1xf32>,
    } else {
    }
    %c0 = arith.constant 0 : index
    %c0_2 = arith.constant 0 : index
    %5 = vector.load %arg3[%c0, %c0_2] : memref<8x128xf32, #tpu.memory_space<vmem>>, vector<8x128xf32>
    %c0_3 = arith.constant 0 : index
    %c0_4 = arith.constant 0 : index
    %6 = vector.load %arg4[%c0_3, %c0_4] : memref<8x128xf32, #tpu.memory_space<vmem>>, vector<8x128xf32>
    %cst = arith.constant 1.000000e+00 : f32
    %7 = vector.broadcast %cst : f32 to vector<8x128xf32>
    %8 = arith.cmpf oeq, %6, %7 : vector<8x128xf32>
    %cst_5 = arith.constant 1.000000e+00 : f32
    %9 = vector.broadcast %cst_5 : f32 to vector<8x128xf32>
    %10 = arith.cmpf olt, %6, %9 : vector<8x128xf32>
    %cst_6 = arith.constant 1.000000e+00 : f32
    %11 = vector.broadcast %cst_6 : f32 to vector<8x128xf32>
    %12 = arith.subf %11, %5 : vector<8x128xf32>
    %13 = arith.select %8, %5, %12 : vector<8x128xi1>, vector<8x128xf32>
    %14 = math.log %13 : vector<8x128xf32>
    %cst_7 = arith.constant 1.000000e+00 : f32
    %15 = vector.broadcast %cst_7 : f32 to vector<8x128xf32>
    %16 = arith.subf %15, %5 : vector<8x128xf32>
    %cst_8 = arith.constant 1.000000e+00 : f32
    %17 = vector.broadcast %cst_8 : f32 to vector<8x128xf32>
    %18 = arith.subf %17, %6 : vector<8x128xf32>
    %19 = arith.mulf %18, %18 : vector<8x128xf32>
    %20 = arith.mulf %16, %16 : vector<8x128xf32>
    %21 = arith.mulf %5, %5 : vector<8x128xf32>
    %22 = arith.mulf %19, %19 : vector<8x128xf32>
    %23 = arith.mulf %21, %22 : vector<8x128xf32>
    %24 = arith.select %8, %20, %23 : vector<8x128xi1>, vector<8x128xf32>
    %25 = arith.mulf %14, %24 : vector<8x128xf32>
    %26 = arith.ori %8, %10 : vector<8x128xi1>
    %cst_9 = arith.constant 0.000000e+00 : f32
    %27 = vector.broadcast %cst_9 : f32 to vector<8x128xf32>
    %28 = arith.select %26, %25, %27 : vector<8x128xi1>, vector<8x128xf32>
    %c0_10 = arith.constant 0 : index
    %c0_11 = arith.constant 0 : index
    %c0_12 = arith.constant 0 : index
    %29 = vector.load %arg5[%c0_10, %c0_11, %c0_12] : memref<1x1x1xf32, #tpu.memory_space<vmem>>, vector<1x1x1xf32>
    %30 = vector.shape_cast %28 : vector<8x128xf32> to vector<1x8x128xf32>
    %cst_13 = arith.constant dense<0.000000e+00> : vector<1xf32>
    %31 = vector.multi_reduction <add>, %30, %cst_13 [1, 2] : vector<1x8x128xf32> to vector<1xf32>
    %32 = vector.shape_cast %31 : vector<1xf32> to vector<1x1x1xf32>
    %33 = vector.extract %32[0, 0, 0] : f32 from vector<1x1x1xf32>
    %34 = vector.broadcast %33 : f32 to vector<1x1x1xf32>
    %35 = arith.addf %29, %34 : vector<1x1x1xf32>
    %c0_14 = arith.constant 0 : index
    %c0_15 = arith.constant 0 : index
    %c0_16 = arith.constant 0 : index
    %36 = vector.load %arg5[%c0_14, %c0_15, %c0_16] : memref<1x1x1xf32, #tpu.memory_space<vmem>>, vector<1x1x1xf32>
    tpu.vector_store %arg5[%c0_14, %c0_15, %c0_16], %35 {strides = array<i32>} : memref<1x1x1xf32, #tpu.memory_space<vmem>>, vector<1x1x1xf32>,
    %c0_17 = arith.constant 0 : index
    %c0_18 = arith.constant 0 : index
    %c0_19 = arith.constant 0 : index
    %37 = vector.load %arg6[%c0_17, %c0_18, %c0_19] : memref<1x1x1xf32, #tpu.memory_space<vmem>>, vector<1x1x1xf32>
    %cst_20 = arith.constant 1.000000e+00 : f32
    %cst_21 = arith.constant 0.000000e+00 : f32
    %38 = vector.broadcast %cst_20 : f32 to vector<8x128xf32>
    %39 = vector.broadcast %cst_21 : f32 to vector<8x128xf32>
    %40 = arith.select %8, %38, %39 : vector<8x128xi1>, vector<8x128xf32>
    %41 = vector.shape_cast %40 : vector<8x128xf32> to vector<1x8x128xf32>
    %cst_22 = arith.constant dense<0.000000e+00> : vector<1xf32>
    %42 = vector.multi_reduction <add>, %41, %cst_22 [1, 2] : vector<1x8x128xf32> to vector<1xf32>
    %43 = vector.shape_cast %42 : vector<1xf32> to vector<1x1x1xf32>
    %44 = vector.extract %43[0, 0, 0] : f32 from vector<1x1x1xf32>
    %45 = vector.broadcast %44 : f32 to vector<1x1x1xf32>
    %46 = arith.addf %37, %45 : vector<1x1x1xf32>
    %c0_23 = arith.constant 0 : index
    %c0_24 = arith.constant 0 : index
    %c0_25 = arith.constant 0 : index
    %47 = vector.load %arg6[%c0_23, %c0_24, %c0_25] : memref<1x1x1xf32, #tpu.memory_space<vmem>>, vector<1x1x1xf32>
    tpu.vector_store %arg6[%c0_23, %c0_24, %c0_25], %46 {strides = array<i32>} : memref<1x1x1xf32, #tpu.memory_space<vmem>>, vector<1x1x1xf32>,
    return
  }
  func.func @transform_0(%arg0: i32, %arg1: i32, %arg2: i32) -> (i32, i32) {
    %c1_i32 = arith.constant 1 : i32
    %0 = arith.muli %arg0, %c1_i32 : i32
    %1 = arith.addi %0, %arg2 : i32
    %c0_i32 = arith.constant 0 : i32
    return %arg1, %1 : i32, i32
  }
  func.func @transform_1(%arg0: i32, %arg1: i32, %arg2: i32) -> (i32, i32) {
    %c1_i32 = arith.constant 1 : i32
    %0 = arith.muli %arg0, %c1_i32 : i32
    %1 = arith.addi %0, %arg2 : i32
    %c0_i32 = arith.constant 0 : i32
    return %arg1, %1 : i32, i32
  }
  func.func @transform_2(%arg0: i32, %arg1: i32, %arg2: i32) -> (i32, i32, i32) {
    %c0_i32 = arith.constant 0 : i32
    %c0_i32_0 = arith.constant 0 : i32
    %c0_i32_1 = arith.constant 0 : i32
    return %arg0, %c0_i32, %c0_i32_0 : i32, i32, i32
  }
  func.func @transform_3(%arg0: i32, %arg1: i32, %arg2: i32) -> (i32, i32, i32) {
    %c0_i32 = arith.constant 0 : i32
    %c0_i32_0 = arith.constant 0 : i32
    %c0_i32_1 = arith.constant 0 : i32
    return %arg0, %c0_i32, %c0_i32_0 : i32, i32, i32
  }
}

</mosaic_0001>

<llo_original>
// kernel: _focal_loss_2d.1
$region0: #{_focal_loss_2d.1}
  #allocation0 [shape = 'u32[]', space=smem, size = 0x4, offset = 0x4, fixed_abs, tag = 'smem constant byte address 0x4 - core index']
  #allocation1 [shape = 'u32[144,128]{1,0:T(1,128)}', space=vmem, size = 0x12000, scoped, tag = 'internal scratch']
  %s0 = inlined_call_operand.hbm [shape: f32[8,256], index: 0, kind: input, shape index: {}]
  %s1 = inlined_call_operand.hbm [shape: f32[8,256], index: 1, kind: input, shape index: {}]
  %s2 = inlined_call_operand.vmem [shape: f32[2,1,1], index: 2, kind: output, shape index: {0}]
  %s3 = inlined_call_operand.vmem [shape: f32[2,1,1], index: 3, kind: output, shape index: {1}]
  %4 = xla_tuple %s2, %s3
  %s5 = sld [smem:[#allocation0]]
  $region61: #{_focal_loss_2d.1} parent=0
    _
  %s7 = ssub.s32 1, %s5
  %s8 = scalar_select 0, %s7, %s5
  $region1: #{_focal_loss_2d.1} parent=0
    #allocation2 [shape = 'u8[8192]{0}', space=vmem, size = 0x2000, scoped, tag = 'input window, operand 0']
    #allocation3 [shape = 's32[2]{0}', space=sflag, size = 0x8, scoped, tag = 'scoped memory for _focal_loss_2d.1']
    #allocation4 [shape = 'u8[8192]{0}', space=vmem, size = 0x2000, scoped, tag = 'input window, operand 1']
    #allocation5 [shape = 's32[2]{0}', space=sflag, size = 0x8, scoped, tag = 'scoped memory for _focal_loss_2d.1']
    %9 = vsyncpa [#allocation3], 0
    %s10 = scalar_lea.sflag [#allocation3], 1
    %11 = vsyncpa %s10, 0
    %12 = vsyncpa [#allocation5], 0
    %s13 = scalar_lea.sflag [#allocation5], 1
    %14 = vsyncpa %s13, 0
    loop: start=0, step=1, limit=4
    $region2: #{_focal_loss_2d.1} parent=1 // loop_pre_header
      _
    $region3: #{_focal_loss_2d.1} parent=1 // loop_header
      %s16 = sphi 0, %s20
      %p17 = scmp.ge.s32.totalorder %s16, 4
      %s23 = sphi 0, %s42
      %s24 = sphi 0, %s38
      %s25 = sphi 0, %s34
      %s26 = sphi 0, %s23
      %s27 = sphi 0, %s24
      %s28 = sphi 0, %s25
      %s29 = sphi 0, %s26
      %s30 = sphi 0, %s27
      %s31 = sphi 0, %s28
      %s49 = sphi 0, %s51
      %s52 = sphi 0, %s49
      %s53 = sphi 0, %s52
      %s69 = sphi 0, %s53
      %s79 = sphi 0, %s81
      %s82 = sphi 0, %s79
      %s83 = sphi 0, %s82
      %s99 = sphi 0, %s83
      %s105 = sphi 0, %s107
      %s108 = sphi 0, %s105
      %s109 = sphi 0, %s108
      %s125 = sphi 0, %s109
      %s131 = sphi 0, %s133
      %s134 = sphi 0, %s131
      %s135 = sphi 0, %s134
      %s151 = sphi 0, %s135
    $region4: #{_focal_loss_2d.1} parent=1 // loop_header_branch
      %19 = sbr.rel (%p17) target = $region8
    $region5: #{_focal_loss_2d.1} parent=1 // loop_body
      %s21 = ssub.s32 %s16, 1
      %s22 = ssub.s32 %s16, 2
      %s32 = sadd.s32 1, %s25
      %p33 = scmp.ge.s32.totalorder %s32, 1
      %s34 = scalar_select %p33, 0, %s32
      %s35 = sadd.s32 1, %s24
      %s36 = scalar_select %p33, %s35, %s24
      %p37 = scmp.ge.s32.totalorder %s36, 1
      %s38 = scalar_select %p37, 0, %s36
      %s39 = sadd.s32 1, %s23
      %s40 = scalar_select %p37, %s39, %s23
      %p41 = scmp.ge.s32.totalorder %s40, 2
      %s42 = scalar_select %p41, 0, %s40
      %s43 = sadd.s32 %s23, %s25
      %s44 = sadd.s32 %s42, %s34
      %s45 = ssub.s32 %s24, %s38
      %s46 = ssub.s32 %s43, %s44
      %s47 = sor.u32 %s45, %s46
      %p48 = scmp.eq.s32.totalorder %s47, 0
      %s50 = sadd.s32 %s49, 1
      %s51 = scalar_select %p48, %s49, %s50
      %p54 = pneg %p48
      %p55 = scmp.eq.s32.totalorder %s16, 1
      %p56 = por %p54, %p55
      %p57 = scmp.ne.s32.totalorder %s49, %s52
      %p58 = scmp.eq.s32.totalorder %s16, 0
      %p59 = por %p57, %p58
      %p60 = scmp.ne.s32.totalorder %s49, %s52
      %p61 = scmp.eq.s32.totalorder %s21, 1
      %p62 = por %p60, %p61
      %p63 = scmp.ne.s32.totalorder %s52, %s53
      %p64 = scmp.eq.s32.totalorder %s21, 0
      %p65 = por %p63, %p64
      %p66 = scmp.ne.s32.totalorder %s52, %s53
      %p67 = scmp.eq.s32.totalorder %s22, 1
      %p68 = por %p66, %p67
      %p70 = scmp.ne.s32.totalorder %s53, %s69
      %p71 = scmp.eq.s32.totalorder %s22, 0
      %p72 = por %p70, %p71
      %s73 = sadd.s32 %s23, %s25
      %s74 = sadd.s32 %s42, %s34
      %s75 = ssub.s32 %s24, %s38
      %s76 = ssub.s32 %s73, %s74
      %s77 = sor.u32 %s75, %s76
      %p78 = scmp.eq.s32.totalorder %s77, 0
      %s80 = sadd.s32 %s79, 1
      %s81 = scalar_select %p78, %s79, %s80
      %p84 = pneg %p78
      %p85 = scmp.eq.s32.totalorder %s16, 1
      %p86 = por %p84, %p85
      %p87 = scmp.ne.s32.totalorder %s79, %s82
      %p88 = scmp.eq.s32.totalorder %s16, 0
      %p89 = por %p87, %p88
      %p90 = scmp.ne.s32.totalorder %s79, %s82
      %p91 = scmp.eq.s32.totalorder %s21, 1
      %p92 = por %p90, %p91
      %p93 = scmp.ne.s32.totalorder %s82, %s83
      %p94 = scmp.eq.s32.totalorder %s21, 0
      %p95 = por %p93, %p94
      %p96 = scmp.ne.s32.totalorder %s82, %s83
      %p97 = scmp.eq.s32.totalorder %s22, 1
      %p98 = por %p96, %p97
      %p100 = scmp.ne.s32.totalorder %s83, %s99
      %p101 = scmp.eq.s32.totalorder %s22, 0
      %p102 = por %p100, %p101
      %s103 = ssub.s32 %s23, %s42
      %p104 = scmp.eq.s32.totalorder %s103, 0
      %s106 = sadd.s32 %s105, 1
      %s107 = scalar_select %p104, %s105, %s106
      %p110 = pneg %p104
      %p111 = scmp.eq.s32.totalorder %s16, 1
      %p112 = por %p110, %p111
      %p113 = scmp.ne.s32.totalorder %s105, %s108
      %p114 = scmp.eq.s32.totalorder %s16, 0
      %p115 = por %p113, %p114
      %p116 = scmp.ne.s32.totalorder %s105, %s108
      %p117 = scmp.eq.s32.totalorder %s21, 1
      %p118 = por %p116, %p117
      %p119 = scmp.ne.s32.totalorder %s108, %s109
      %p120 = scmp.eq.s32.totalorder %s21, 0
      %p121 = por %p119, %p120
      %p122 = scmp.ne.s32.totalorder %s108, %s109
      %p123 = scmp.eq.s32.totalorder %s22, 1
      %p124 = por %p122, %p123
      %p126 = scmp.ne.s32.totalorder %s109, %s125
      %p127 = scmp.eq.s32.totalorder %s22, 0
      %p128 = por %p126, %p127
      %s129 = ssub.s32 %s23, %s42
      %p130 = scmp.eq.s32.totalorder %s129, 0
      %s132 = sadd.s32 %s131, 1
      %s133 = scalar_select %p130, %s131, %s132
      %p136 = pneg %p130
      %p137 = scmp.eq.s32.totalorder %s16, 1
      %p138 = por %p136, %p137
      %p139 = scmp.ne.s32.totalorder %s131, %s134
      %p140 = scmp.eq.s32.totalorder %s16, 0
      %p141 = por %p139, %p140
      %p142 = scmp.ne.s32.totalorder %s131, %s134
      %p143 = scmp.eq.s32.totalorder %s21, 1
      %p144 = por %p142, %p143
      %p145 = scmp.ne.s32.totalorder %s134, %s135
      %p146 = scmp.eq.s32.totalorder %s21, 0
      %p147 = por %p145, %p146
      %p148 = scmp.ne.s32.totalorder %s134, %s135
      %p149 = scmp.eq.s32.totalorder %s22, 1
      %p150 = por %p148, %p149
      %p152 = scmp.ne.s32.totalorder %s135, %s151
      %p153 = scmp.eq.s32.totalorder %s22, 0
      %p154 = por %p152, %p153
      %p155 = scmp.le.s32.totalorder 1, %s16
      %p156 = scmp.lt.s32.totalorder %s16, 3
      %p157 = pnand %p155, %p156
      %p158 = pneg %p157
      // Predicated region
      $region9: #{_focal_loss_2d.1} parent=5 // pred_check
        _
      $region10: #{_focal_loss_2d.1} parent=5 // pred_check_branch
        %160 = sbr.rel (%p157) target = $region12
      $region11: #{_focal_loss_2d.1} parent=5 // pred_region
        %s161 = ssub.s32 %s16, 1
      $region12: #{_focal_loss_2d.1} parent=5 // pred_fallthru
        _
      %p162 = scmp.lt.s32.totalorder %s16, 2
      // Predicated region
      $region13: #{_focal_loss_2d.1} parent=5 // pred_check
        %p163 = pneg %p162
      $region14: #{_focal_loss_2d.1} parent=5 // pred_check_branch
        %165 = sbr.rel (%p163) target = $region16
      $region15: #{_focal_loss_2d.1} parent=5 // pred_region
        // Predicated region
        $region17: #{_focal_loss_2d.1} parent=15 // pred_check
          %p166 = pneg %p59
        $region18: #{_focal_loss_2d.1} parent=15 // pred_check_branch
          %168 = sbr.rel (%p166) target = $region20
        $region19: #{_focal_loss_2d.1} parent=15 // pred_region
          %s169 = sand.u32 %s49, 1
          %s170 = scalar_lea.sflag [#allocation3], %s169
          %s171 = sand.u32 %s49, 1
          %s172 = smul.addr %s171, 8
          %s173 = scalar_lea.vmem [#allocation2], %s172
          %s174 = sadd.s32 %s23, %s25
          %s176 = ssub.s32 128, 128
          %177 = vsyncadd %s170, %s176
          %s178 = smul.addr %s24, 2
          %s179 = sadd.s32 %s174, %s178
          %s180 = smul.addr %s179, 128
          %s181 = scalar_lea.hbm %s0, %s180
          %s183 = sshll.u32 %s173, 4
          %s184 = int_to_ptr.vmem [resolvable:$true] %s183
          %186 = dma.hbm_to_vmem [thread:$0]  %s181, 128, %s184, %s170
        $region20: #{_focal_loss_2d.1} parent=15 // pred_fallthru
          _
        // Predicated region
        $region21: #{_focal_loss_2d.1} parent=15 // pred_check
          %p187 = pneg %p89
        $region22: #{_focal_loss_2d.1} parent=15 // pred_check_branch
          %189 = sbr.rel (%p187) target = $region24
        $region23: #{_focal_loss_2d.1} parent=15 // pred_region
          %s190 = sand.u32 %s79, 1
          %s191 = scalar_lea.sflag [#allocation5], %s190
          %s192 = sand.u32 %s79, 1
          %s193 = smul.addr %s192, 8
          %s194 = scalar_lea.vmem [#allocation4], %s193
          %s195 = sadd.s32 %s23, %s25
          %s197 = ssub.s32 128, 128
          %198 = vsyncadd %s191, %s197
          %s199 = smul.addr %s24, 2
          %s200 = sadd.s32 %s195, %s199
          %s201 = smul.addr %s200, 128
          %s202 = scalar_lea.hbm %s1, %s201
          %s204 = sshll.u32 %s194, 4
          %s205 = int_to_ptr.vmem [resolvable:$true] %s204
          %207 = dma.hbm_to_vmem [thread:$0]  %s202, 128, %s205, %s191
        $region24: #{_focal_loss_2d.1} parent=15 // pred_fallthru
          _
      $region16: #{_focal_loss_2d.1} parent=5 // pred_fallthru
        _
      %p208 = scmp.le.s32.totalorder 1, %s16
      %p209 = scmp.lt.s32.totalorder %s16, 3
      %p210 = pnand %p208, %p209
      %p211 = pneg %p210
      // Predicated region
      $region25: #{_focal_loss_2d.1} parent=5 // pred_check
        _
      $region26: #{_focal_loss_2d.1} parent=5 // pred_check_branch
        %213 = sbr.rel (%p210) target = $region28
      $region27: #{_focal_loss_2d.1} parent=5 // pred_region
        %s214 = ssub.s32 %s16, 1
        %s215 = sand.u32 %s52, 1
        %s216 = scalar_lea.sflag [#allocation3], %s215
        %s217 = sand.u32 %s52, 1
        %s218 = smul.addr %s217, 8
        %s219 = scalar_lea.vmem [#allocation2], %s218
        // Predicated region
        $region29: #{_focal_loss_2d.1} parent=27 // pred_check
          %p220 = pneg %p65
        $region30: #{_focal_loss_2d.1} parent=27 // pred_check_branch
          %222 = sbr.rel (%p220) target = $region32
        $region31: #{_focal_loss_2d.1} parent=27 // pred_region
          %223 = dma.done %s216, 128
        $region32: #{_focal_loss_2d.1} parent=27 // pred_fallthru
          _
        %s224 = sand.u32 %s82, 1
        %s225 = scalar_lea.sflag [#allocation5], %s224
        %s226 = sand.u32 %s82, 1
        %s227 = smul.addr %s226, 8
        %s228 = scalar_lea.vmem [#allocation4], %s227
        // Predicated region
        $region33: #{_focal_loss_2d.1} parent=27 // pred_check
          %p229 = pneg %p95
        $region34: #{_focal_loss_2d.1} parent=27 // pred_check_branch
          %231 = sbr.rel (%p229) target = $region36
        $region35: #{_focal_loss_2d.1} parent=27 // pred_region
          %232 = dma.done %s225, 128
        $region36: #{_focal_loss_2d.1} parent=27 // pred_fallthru
          _
        %s233 = sand.u32 %s52, 1
        %s234 = scalar_lea.sflag [#allocation3], %s233
        %s235 = sand.u32 %s52, 1
        %s236 = smul.addr %s235, 8
        %s237 = scalar_lea.vmem [#allocation2], %s236
        %p238 = pneg %p65
        %p239 = pneg %p62
        %s240 = sand.u32 %s82, 1
        %s241 = scalar_lea.sflag [#allocation5], %s240
        %s242 = sand.u32 %s82, 1
        %s243 = smul.addr %s242, 8
        %s244 = scalar_lea.vmem [#allocation4], %s243
        %p245 = pneg %p95
        %p246 = pneg %p92
        %p247 = pneg %p121
        %p248 = pneg %p118
        %p249 = scmp.lt.s32.totalorder %s26, 1
        %s250 = scalar_select %p249, %s26, 1
        %s251 = scalar_lea.vmem %s2, %s250
        %p252 = pneg %p147
        %p253 = pneg %p144
        %p254 = scmp.lt.s32.totalorder %s26, 1
        %s255 = scalar_select %p254, %s26, 1
        %s256 = scalar_lea.vmem %s3, %s255
        %s257 = sadd.s32 %s26, %s28
        %s258 = sadd.s32 %s26, %s28
        %p259 = scmp.lt.s32.totalorder %s26, 1
        %s260 = scalar_select %p259, %s26, 1
        %s261 = scalar_lea.vmem %s2, %s260
        %p262 = scmp.lt.s32.totalorder %s26, 1
        %s263 = scalar_select %p262, %s26, 1
        %s264 = scalar_lea.vmem %s3, %s263
        %p265 = scmp.eq.s32.totalorder %s27, 0
        %p266 = scmp.eq.s32.totalorder %s28, 0
        %p267 = pnand %p265, %p266
        %p268 = pneg %p267
        // Predicated region
        $region37: #{_focal_loss_2d.1} parent=27 // pred_check
          _
        $region38: #{_focal_loss_2d.1} parent=27 // pred_check_branch
          %270 = sbr.rel (%p267) target = $region40
        $region39: #{_focal_loss_2d.1} parent=27 // pred_region
          %vm271 = vcmask 0
          %272 = vst.msk [vmem:[%s261] sm:$0x1] %vm271, 0.0
          %273 = vst.msk [vmem:[%s264] sm:$0x1] %vm271, 0.0
        $region40: #{_focal_loss_2d.1} parent=27 // pred_fallthru
          _
        %v274 = vld [vmem:[%s219] sm:$0xff]
        %v275 = vld [vmem:[%s228] sm:$0xff]
        %vm276 = vcmp.eq.f32.partialorder %v275, 1.0
        %vm277 = vcmp.lt.f32.partialorder %v275, 1.0
        %v278 = vsub.f32 1.0, %v274
        %v279 = vsel %vm276, %v274, %v278
        %v280 = vlog2.pop %v279
        %v281 = vmul.f32 %v280, 0.6931472
        %v282 = vsub.f32 1.0, %v275
        %v283 = vmul.f32 %v282, %v282
        %v284 = vmul.f32 %v278, %v278
        %v285 = vmul.f32 %v274, %v274
        %v286 = vmul.f32 %v283, %v283
        %v287 = vmul.f32 %v285, %v286
        %v288 = vsel %vm276, %v284, %v287
        %v289 = vmul.f32 %v281, %v288
        %vm290 = vmor %vm276, %vm277
        %v291 = vsel %vm290, %v289, 0.0
        %v292 = vld [vmem:[%s261] sm:$0x1]
        %293 = vadd.xlane.f32.xlu0 %v291
        %v294 = vpop.xlane.xlu0 %293
        %v295 = vrot.slane %v294, 4
        %v296 = vadd.f32 %v294, %v295
        %v297 = vrot.slane %v296, 2
        %v298 = vadd.f32 %v296, %v297
        %v299 = vrot.slane %v298, 1
        %v300 = vadd.f32 %v298, %v299
        %s301 = vtos %v300
        %v302 = vstv %s301
        %v303 = vadd.f32 %v292, %v302
        %vm304 = vcmask 0
        %305 = vst.msk [vmem:[%s261] sm:$0x1] %vm304, %v303
        %v306 = vld [vmem:[%s264] sm:$0x1]
        %v307 = vsel %vm276, 1.0, 0.0
        %308 = vadd.xlane.f32.xlu0 %v307
        %v309 = vpop.xlane.xlu0 %308
        %v310 = vrot.slane %v309, 4
        %v311 = vadd.f32 %v309, %v310
        %v312 = vrot.slane %v311, 2
        %v313 = vadd.f32 %v311, %v312
        %v314 = vrot.slane %v313, 1
        %v315 = vadd.f32 %v313, %v314
        %s316 = vtos %v315
        %v317 = vstv %s316
        %v318 = vadd.f32 %v306, %v317
        %319 = vst.msk [vmem:[%s264] sm:$0x1] %vm304, %v318
        %p320 = scmp.lt.s32.totalorder %s26, 1
        %s321 = scalar_select %p320, %s26, 1
        %s322 = scalar_lea.vmem %s2, %s321
        %p323 = scmp.lt.s32.totalorder %s26, 1
        %s324 = scalar_select %p323, %s26, 1
        %s325 = scalar_lea.vmem %s3, %s324
        // Predicated region
        $region41: #{_focal_loss_2d.1} parent=27 // pred_check
          %p326 = pneg %p118
        $region42: #{_focal_loss_2d.1} parent=27 // pred_check_branch
          %328 = sbr.rel (%p326) target = $region44
        $region43: #{_focal_loss_2d.1} parent=27 // pred_region
          _
        $region44: #{_focal_loss_2d.1} parent=27 // pred_fallthru
          _
        // Predicated region
        $region45: #{_focal_loss_2d.1} parent=27 // pred_check
          %p329 = pneg %p144
        $region46: #{_focal_loss_2d.1} parent=27 // pred_check_branch
          %331 = sbr.rel (%p329) target = $region48
        $region47: #{_focal_loss_2d.1} parent=27 // pred_region
          _
        $region48: #{_focal_loss_2d.1} parent=27 // pred_fallthru
          _
      $region28: #{_focal_loss_2d.1} parent=5 // pred_fallthru
        _
      %p332 = scmp.le.s32.totalorder 2, %s16
      // Predicated region
      $region49: #{_focal_loss_2d.1} parent=5 // pred_check
        %p333 = pneg %p332
      $region50: #{_focal_loss_2d.1} parent=5 // pred_check_branch
        %335 = sbr.rel (%p333) target = $region52
      $region51: #{_focal_loss_2d.1} parent=5 // pred_region
        %s336 = ssub.s32 %s16, 2
        // Predicated region
        $region53: #{_focal_loss_2d.1} parent=51 // pred_check
          %p337 = pneg %p124
        $region54: #{_focal_loss_2d.1} parent=51 // pred_check_branch
          %339 = sbr.rel (%p337) target = $region56
        $region55: #{_focal_loss_2d.1} parent=51 // pred_region
          %p340 = scmp.lt.s32.totalorder %s29, 1
          %s341 = scalar_select %p340, %s29, 1
          %s342 = scalar_lea.vmem %s2, %s341
        $region56: #{_focal_loss_2d.1} parent=51 // pred_fallthru
          _
        // Predicated region
        $region57: #{_focal_loss_2d.1} parent=51 // pred_check
          %p343 = pneg %p150
        $region58: #{_focal_loss_2d.1} parent=51 // pred_check_branch
          %345 = sbr.rel (%p343) target = $region60
        $region59: #{_focal_loss_2d.1} parent=51 // pred_region
          %p346 = scmp.lt.s32.totalorder %s29, 1
          %s347 = scalar_select %p346, %s29, 1
          %s348 = scalar_lea.vmem %s3, %s347
        $region60: #{_focal_loss_2d.1} parent=51 // pred_fallthru
          _
      $region52: #{_focal_loss_2d.1} parent=5 // pred_fallthru
        _
    $region6: #{_focal_loss_2d.1} parent=1 // loop_footer
      %s20 = sadd.s32 1, %s16
    $region7: #{_focal_loss_2d.1} parent=1 // loop_footer_branch
      %15 = sbr.rel target = $region3
    $region8: #{_focal_loss_2d.1} parent=1 // loop_exit
      _
    %349 = vsyncpa [#allocation3], 1
    %s350 = scalar_lea.sflag [#allocation3], 1
    %351 = vsyncpa %s350, 1
    %352 = vsyncpa [#allocation5], 1
    %s353 = scalar_lea.sflag [#allocation5], 1
    %354 = vsyncpa %s353, 1

</llo_original>
